<compile_context>
chip_gen: v7x
topology: tpu7x:2x2x1
jax: 0.10.0
libtpu: 0.0.40
codegen_flags: <defaults>
</compile_context>

<pallas_src>
import functools
import math

import jax
import jax.numpy as jnp
import numpy as np
from jax.experimental import pallas as pl
from jax.experimental.pallas import tpu as pltpu


# --------------------------------- kernels ---------------------------------

def _indicator_kernel(x_ref, o_ref, *, is_nan, missing_value):
    x = x_ref[...].astype(jnp.float32)   # torch promotes to f32 before eq
    ind = jnp.isnan(x) if is_nan else (x == jnp.float32(missing_value))
    o_ref[...] = ind.astype(jnp.float32)


def _indicator_select_kernel(x_ref, sel_ref, o_ref, acc_ref, *,
                             is_nan, missing_value):
    k = pl.program_id(1)

    @pl.when(k == 0)
    def _():
        acc_ref[...] = jnp.zeros_like(acc_ref)

    x = x_ref[...].astype(jnp.float32)
    ind = jnp.isnan(x) if is_nan else (x == jnp.float32(missing_value))
    # One-hot column select on the MXU.  Indicator values are exactly 0/1 and
    # every selector column has exactly one nonzero row, so the bf16 matmul
    # with f32 accumulation is exact.
    acc_ref[...] += jnp.dot(ind.astype(jnp.bfloat16), sel_ref[...],
                            preferred_element_type=jnp.float32)

    @pl.when(k == pl.num_programs(1) - 1)
    def _():
        o_ref[...] = acc_ref[...]


# --------------------------------- wrapper ---------------------------------

def _is_nan_missing(missing_value):
    return (
        missing_value is None
        or (isinstance(missing_value, str) and missing_value == "NaN")
        or (isinstance(missing_value, (float, np.floating))
            and math.isnan(float(missing_value)))
    )


def _choose_tiles(N, F, itemsize):
    """Pick a (TM, TF) block shape for a memory-bound elementwise (N, F) pass."""
    # Lane (feature) tile: full F keeps stores lane-dense; very wide tables
    # use 1024-lane (multiple-of-128) chunks.
    TF = F if F <= 1024 else 1024
    # Sublane granule: 8 for 4-byte dtypes, 16 for bf16/fp16, 32 for 1-byte.
    g = max(8, 32 // max(1, itemsize))
    if N <= g:
        return N, TF  # full row extent (allowed even when not granule-aligned)
    # ~4 MiB of f32 output per block -> in+out, double-buffered <= ~16 MiB.
    rows_for_4mib = max(g, ((1 << 20) // TF) // g * g)
    # Keep >= ~8 row grid steps for large N (pipelining + megacore).
    rows_for_steps = max(g, (pl.cdiv(N, 8) // g) * g)
    TM = min(2048, rows_for_4mib, rows_for_steps)
    return TM, TF


_VMEM_LIMIT = 48 * 1024 * 1024  # > v5e's 16 MiB scoped default, < v7x's 64 MiB


def missing_indicator(x, *, missing_value=np.nan, features="all",
                      column_indices=None):
    """Pallas implementation of MissingIndicator.forward."""
    is_nan = _is_nan_missing(missing_value)
    mv = 0.0 if is_nan else float(missing_value)

    N, F = x.shape
    TM, TF = _choose_tiles(N, F, jnp.dtype(x.dtype).itemsize)

    if features == "all":
        grid = (pl.cdiv(N, TM), pl.cdiv(F, TF))
        spec = pl.BlockSpec((TM, TF), lambda i, j: (i, j))
        return pl.pallas_call(
            functools.partial(_indicator_kernel, is_nan=is_nan,
                              missing_value=mv),
            out_shape=jax.ShapeDtypeStruct((N, F), jnp.float32),
            grid=grid,
            in_specs=[spec],
            out_specs=spec,
            compiler_params=pltpu.CompilerParams(
                dimension_semantics=("parallel", "parallel"),
                vmem_limit_bytes=_VMEM_LIMIT,
            ),
        )(x)

    # ----- subset path: fused index_select via one-hot selector matmul -----
    idx = np.asarray(column_indices, dtype=np.int64).reshape(-1)
    K = int(idx.shape[0])
    n_fblocks = pl.cdiv(F, TF)
    F_pad = n_fblocks * TF
    # (F_pad, K) one-hot selector.  Rows >= F are explicit zeros so the
    # undefined tail of a ragged last feature block contributes nothing.
    # Note: out-of-range indices yield an all-zero column instead of raising
    # like torch.index_select.
    sel = (np.arange(F_pad)[:, None] == idx[None, :]).astype(np.float32)
    sel = jnp.asarray(sel, dtype=jnp.bfloat16)

    grid = (pl.cdiv(N, TM), n_fblocks)
    return pl.pallas_call(
        functools.partial(_indicator_select_kernel, is_nan=is_nan,
                          missing_value=mv),
        out_shape=jax.ShapeDtypeStruct((N, K), jnp.float32),
        grid=grid,
        in_specs=[pl.BlockSpec((TM, TF), lambda i, k: (i, k)),
                  pl.BlockSpec((TF, K), lambda i, k: (k, 0))],
        out_specs=pl.BlockSpec((TM, K), lambda i, k: (i, 0)),
        scratch_shapes=[pltpu.VMEM((TM, K), jnp.float32)],
        compiler_params=pltpu.CompilerParams(
            dimension_semantics=("parallel", "arbitrary"),
            vmem_limit_bytes=_VMEM_LIMIT,
        ),
    )(x, sel)


# --------------------------------- testing ---------------------------------

def _reference(x, *, missing_value, features, column_indices):
    is_nan = _is_nan_missing(missing_value)
    xs = x
    if features != "all":
        xs = jnp.take(x, jnp.asarray(column_indices, dtype=jnp.int32), axis=1)
    xs = xs.astype(jnp.float32)
    if is_nan:
        return jnp.isnan(xs).astype(jnp.float32)
    return (xs == jnp.float32(missing_value)).astype(jnp.float32)


if __name__ == "__main__":
    key = jax.random.PRNGKey(0)
    N, F = 16, 256
    x = jax.random.normal(key, (N, F), dtype=jnp.float32)

    # Deterministically plant "missing" entries: NaNs and sentinel -1.0 values.
    nan_rows = jnp.arange(0, N, 3)
    nan_cols = jnp.arange(0, F, 17)
    x = x.at[nan_rows[:, None], nan_cols[None, :]].set(jnp.nan)
    sent_rows = jnp.arange(1, N, 4)
    sent_cols = jnp.arange(5, F, 23)
    x = x.at[sent_rows[:, None], sent_cols[None, :]].set(-1.0)

    x_bf16 = x.astype(jnp.bfloat16)   # NaNs / -1.0 sentinel survive the cast
    x_ragged = x[:13, :200]           # ragged (non-granule) tiles

    # Wide table -> exercises feature-block accumulation + zero-padded selector.
    Fw = 2176
    xw = jax.random.normal(jax.random.PRNGKey(1), (N, Fw), dtype=jnp.float32)
    xw = xw.at[jnp.arange(0, N, 2)[:, None],
               jnp.arange(3, Fw, 111)[None, :]].set(jnp.nan)

    # Deterministic "fitted" column indices (features_ from sklearn).
    column_indices = [0, 3, 5, 7, 17, 22, 34, 129]
    wide_indices = [0, 3, 5, 1025, 1500, 2100, 2175, 7]

    cases = [
        (x, dict(missing_value=np.nan, features="all", column_indices=None)),
        (x, dict(missing_value=np.nan, features="subset",
                 column_indices=column_indices)),
        (x, dict(missing_value=-1.0, features="all", column_indices=None)),
        (x, dict(missing_value=-1.0, features="subset",
                 column_indices=column_indices)),
        (x_bf16, dict(missing_value=np.nan, features="all",
                      column_indices=None)),
        (x_bf16, dict(missing_value=np.nan, features="subset",
                      column_indices=column_indices)),
        (x_ragged, dict(missing_value=-1.0, features="all",
                        column_indices=None)),
        (xw, dict(missing_value=np.nan, features="subset",
                  column_indices=wide_indices)),
    ]

    ok = True
    for xi, cfg in cases:
        out = jax.block_until_ready(missing_indicator(xi, **cfg))
        ref = _reference(xi, **cfg)
        if out.shape != ref.shape or out.dtype != jnp.float32:
            ok = False
        if not bool(jnp.all(out == ref)):
            ok = False

    print("KERNEL_OK" if ok else "KERNEL_MISMATCH")
</pallas_src>

<mosaic_0001>
module attributes {stable_mosaic.version = 11 : i64} {
  func.func @_indicator_kernel(%arg0: i32, %arg1: i32, %arg2: memref<8x256xf32, #tpu.memory_space<vmem>>, %arg3: memref<8x256xf32, #tpu.memory_space<vmem>>) attributes {dimension_semantics = [#tpu.dimension_semantics<parallel>, #tpu.dimension_semantics<parallel>], iteration_bounds = array<i64: 2, 1>, scalar_prefetch = 0 : i64, scratch_operands = 0 : i64, tpu.core_type = #tpu.core_type<tc>, window_params = [{transform_indices = @transform_0, window_bounds = array<i64: 8, 256>}, {transform_indices = @transform_1, window_bounds = array<i64: 8, 256>}]} {
    %c0 = arith.constant 0 : index
    %c0_0 = arith.constant 0 : index
    %0 = vector.load %arg2[%c0, %c0_0] : memref<8x256xf32, #tpu.memory_space<vmem>>, vector<8x256xf32>
    %1 = arith.cmpf one, %0, %0 : vector<8x256xf32>
    %2 = arith.extui %1 : vector<8x256xi1> to vector<8x256xi32>
    %3 = arith.sitofp %2 : vector<8x256xi32> to vector<8x256xf32>
    %c0_1 = arith.constant 0 : index
    %c0_2 = arith.constant 0 : index
    %4 = vector.load %arg3[%c0_1, %c0_2] : memref<8x256xf32, #tpu.memory_space<vmem>>, vector<8x256xf32>
    tpu.vector_store %arg3[%c0_1, %c0_2], %3 {strides = array<i32>} : memref<8x256xf32, #tpu.memory_space<vmem>>, vector<8x256xf32>,
    return
  }
  func.func @transform_0(%arg0: i32, %arg1: i32) -> (i32, i32) {
    %c0_i32 = arith.constant 0 : i32
    return %arg0, %arg1 : i32, i32
  }
  func.func @transform_1(%arg0: i32, %arg1: i32) -> (i32, i32) {
    %c0_i32 = arith.constant 0 : i32
    return %arg0, %arg1 : i32, i32
  }
}

</mosaic_0001>

<llo_original>
// kernel: tpu_custom_call.1
$region0: #{tpu_custom_call.1}
  #allocation0 [shape = 'u32[]', space=smem, size = 0x4, offset = 0x4, fixed_abs, tag = 'smem constant byte address 0x4 - core index']
  #allocation1 [shape = 'u32[144,128]{1,0:T(1,128)}', space=vmem, size = 0x12000, scoped, tag = 'internal scratch']
  %s0 = inlined_call_operand.hbm [shape: f32[16,256], index: 0, kind: input, shape index: {}]
  %s1 = inlined_call_operand.hbm [shape: f32[16,256], index: 1, kind: output, shape index: {}]
  %s2 = sld [smem:[#allocation0]]
  $region41: #{tpu_custom_call.1} parent=0
    _
  %s4 = ssub.s32 1, %s2
  %s5 = scalar_select 0, %s4, %s2
  $region1: #{tpu_custom_call.1} parent=0
    #allocation2 [shape = 'u8[16384]{0}', space=vmem, size = 0x4000, scoped, tag = 'input window, operand 0']
    #allocation3 [shape = 's32[2]{0}', space=sflag, size = 0x8, scoped, tag = 'scoped memory for tpu_custom_call.1']
    #allocation4 [shape = 's32[2]{0}', space=sflag, size = 0x8, scoped, tag = 'scoped memory for tpu_custom_call.1']
    #allocation5 [shape = 'u8[16384]{0}', space=vmem, size = 0x4000, scoped, tag = 'output window, operand 0']
    %6 = vsyncpa [#allocation3], 0
    %s7 = scalar_lea.sflag [#allocation3], 1
    %8 = vsyncpa %s7, 0
    %9 = vsyncpa [#allocation4], 0
    %s10 = scalar_lea.sflag [#allocation4], 1
    %11 = vsyncpa %s10, 0
    loop: start=0, step=1, limit=4
    $region2: #{tpu_custom_call.1} parent=1 // loop_pre_header
      _
    $region3: #{tpu_custom_call.1} parent=1 // loop_header
      %s13 = sphi 0, %s17
      %p14 = scmp.ge.s32.totalorder %s13, 4
      %s20 = sphi 0, %s32
      %s21 = sphi 0, %s28
      %s22 = sphi 0, %s20
      %s23 = sphi 0, %s21
      %s24 = sphi 0, %s22
      %s25 = sphi 0, %s23
      %s37 = sphi 0, %s39
      %s40 = sphi 0, %s37
      %s41 = sphi 0, %s40
      %s57 = sphi 0, %s41
      %s65 = sphi 0, %s67
      %s68 = sphi 0, %s65
      %s69 = sphi 0, %s68
      %s85 = sphi 0, %s69
    $region4: #{tpu_custom_call.1} parent=1 // loop_header_branch
      %16 = sbr.rel (%p14) target = $region8
    $region5: #{tpu_custom_call.1} parent=1 // loop_body
      %s18 = ssub.s32 %s13, 1
      %s19 = ssub.s32 %s13, 2
      %s26 = sadd.s32 1, %s21
      %p27 = scmp.ge.s32.totalorder %s26, 1
      %s28 = scalar_select %p27, 0, %s26
      %s29 = sadd.s32 1, %s20
      %s30 = scalar_select %p27, %s29, %s20
      %p31 = scmp.ge.s32.totalorder %s30, 2
      %s32 = scalar_select %p31, 0, %s30
      %s33 = ssub.s32 %s20, %s32
      %s34 = ssub.s32 %s21, %s28
      %s35 = sor.u32 %s33, %s34
      %p36 = scmp.eq.s32.totalorder %s35, 0
      %s38 = sadd.s32 %s37, 1
      %s39 = scalar_select %p36, %s37, %s38
      %p42 = pneg %p36
      %p43 = scmp.eq.s32.totalorder %s13, 1
      %p44 = por %p42, %p43
      %p45 = scmp.ne.s32.totalorder %s37, %s40
      %p46 = scmp.eq.s32.totalorder %s13, 0
      %p47 = por %p45, %p46
      %p48 = scmp.ne.s32.totalorder %s37, %s40
      %p49 = scmp.eq.s32.totalorder %s18, 1
      %p50 = por %p48, %p49
      %p51 = scmp.ne.s32.totalorder %s40, %s41
      %p52 = scmp.eq.s32.totalorder %s18, 0
      %p53 = por %p51, %p52
      %p54 = scmp.ne.s32.totalorder %s40, %s41
      %p55 = scmp.eq.s32.totalorder %s19, 1
      %p56 = por %p54, %p55
      %p58 = scmp.ne.s32.totalorder %s41, %s57
      %p59 = scmp.eq.s32.totalorder %s19, 0
      %p60 = por %p58, %p59
      %s61 = ssub.s32 %s20, %s32
      %s62 = ssub.s32 %s21, %s28
      %s63 = sor.u32 %s61, %s62
      %p64 = scmp.eq.s32.totalorder %s63, 0
      %s66 = sadd.s32 %s65, 1
      %s67 = scalar_select %p64, %s65, %s66
      %p70 = pneg %p64
      %p71 = scmp.eq.s32.totalorder %s13, 1
      %p72 = por %p70, %p71
      %p73 = scmp.ne.s32.totalorder %s65, %s68
      %p74 = scmp.eq.s32.totalorder %s13, 0
      %p75 = por %p73, %p74
      %p76 = scmp.ne.s32.totalorder %s65, %s68
      %p77 = scmp.eq.s32.totalorder %s18, 1
      %p78 = por %p76, %p77
      %p79 = scmp.ne.s32.totalorder %s68, %s69
      %p80 = scmp.eq.s32.totalorder %s18, 0
      %p81 = por %p79, %p80
      %p82 = scmp.ne.s32.totalorder %s68, %s69
      %p83 = scmp.eq.s32.totalorder %s19, 1
      %p84 = por %p82, %p83
      %p86 = scmp.ne.s32.totalorder %s69, %s85
      %p87 = scmp.eq.s32.totalorder %s19, 0
      %p88 = por %p86, %p87
      %p89 = scmp.le.s32.totalorder 1, %s13
      %p90 = scmp.lt.s32.totalorder %s13, 3
      %p91 = pnand %p89, %p90
      %p92 = pneg %p91
      // Predicated region
      $region9: #{tpu_custom_call.1} parent=5 // pred_check
        _
      $region10: #{tpu_custom_call.1} parent=5 // pred_check_branch
        %94 = sbr.rel (%p91) target = $region12
      $region11: #{tpu_custom_call.1} parent=5 // pred_region
        %s95 = ssub.s32 %s13, 1
      $region12: #{tpu_custom_call.1} parent=5 // pred_fallthru
        _
      %p96 = scmp.lt.s32.totalorder %s13, 2
      // Predicated region
      $region13: #{tpu_custom_call.1} parent=5 // pred_check
        %p97 = pneg %p96
      $region14: #{tpu_custom_call.1} parent=5 // pred_check_branch
        %99 = sbr.rel (%p97) target = $region16
      $region15: #{tpu_custom_call.1} parent=5 // pred_region
        // Predicated region
        $region17: #{tpu_custom_call.1} parent=15 // pred_check
          %p100 = pneg %p47
        $region18: #{tpu_custom_call.1} parent=15 // pred_check_branch
          %102 = sbr.rel (%p100) target = $region20
        $region19: #{tpu_custom_call.1} parent=15 // pred_region
          %s103 = sand.u32 %s37, 1
          %s104 = scalar_lea.sflag [#allocation3], %s103
          %s105 = sand.u32 %s37, 1
          %s106 = smul.addr %s105, 16
          %s107 = scalar_lea.vmem [#allocation2], %s106
          %s108 = smul.u32 2, %s21
          %s110 = ssub.s32 256, 256
          %111 = vsyncadd %s104, %s110
          %s112 = smul.addr %s20, 2
          %s113 = sadd.s32 %s108, %s112
          %s114 = smul.addr %s113, 128
          %s115 = scalar_lea.hbm %s0, %s114
          %s117 = sshll.u32 %s107, 4
          %s118 = int_to_ptr.vmem [resolvable:$true] %s117
          %120 = dma.hbm_to_vmem [thread:$0]  %s115, 256, %s118, %s104
        $region20: #{tpu_custom_call.1} parent=15 // pred_fallthru
          _
      $region16: #{tpu_custom_call.1} parent=5 // pred_fallthru
        _
      %p121 = scmp.le.s32.totalorder 1, %s13
      %p122 = scmp.lt.s32.totalorder %s13, 3
      %p123 = pnand %p121, %p122
      %p124 = pneg %p123
      // Predicated region
      $region21: #{tpu_custom_call.1} parent=5 // pred_check
        _
      $region22: #{tpu_custom_call.1} parent=5 // pred_check_branch
        %126 = sbr.rel (%p123) target = $region24
      $region23: #{tpu_custom_call.1} parent=5 // pred_region
        %s127 = ssub.s32 %s13, 1
        %s128 = sand.u32 %s40, 1
        %s129 = scalar_lea.sflag [#allocation3], %s128
        %s130 = sand.u32 %s40, 1
        %s131 = smul.addr %s130, 16
        %s132 = scalar_lea.vmem [#allocation2], %s131
        // Predicated region
        $region25: #{tpu_custom_call.1} parent=23 // pred_check
          %p133 = pneg %p53
        $region26: #{tpu_custom_call.1} parent=23 // pred_check_branch
          %135 = sbr.rel (%p133) target = $region28
        $region27: #{tpu_custom_call.1} parent=23 // pred_region
          %136 = dma.done %s129, 256
        $region28: #{tpu_custom_call.1} parent=23 // pred_fallthru
          _
        %s137 = sand.u32 %s40, 1
        %s138 = scalar_lea.sflag [#allocation3], %s137
        %s139 = sand.u32 %s40, 1
        %s140 = smul.addr %s139, 16
        %s141 = scalar_lea.vmem [#allocation2], %s140
        %p142 = pneg %p53
        %p143 = pneg %p50
        %p144 = pneg %p81
        %p145 = pneg %p78
        %s146 = sand.u32 %s68, 1
        %s147 = scalar_lea.sflag [#allocation4], %s146
        %s148 = sand.u32 %s68, 1
        %s149 = smul.addr %s148, 16
        %s150 = scalar_lea.vmem [#allocation5], %s149
        %s151 = smul.u32 2, %s23
        %s152 = smul.u32 2, %s23
        %v153 = vld [vmem:[%s132] sm:$0xff]
        %v154 = vld [vmem:[%s132 + $0x8] sm:$0xff]
        %vm155 = vcmp.ne.f32.partialorder %v153, %v153
        %vm156 = vcmp.ne.f32.partialorder %v154, %v154
        %v157 = vsel %vm155, 1, 0
        %v158 = vsel %vm156, 1, 0
        %v159 = vcvt.s32.f32 %v157
        %v160 = vcvt.s32.f32 %v158
        %161 = vst [vmem:[%s150] sm:$0xff] %v159
        %162 = vst [vmem:[%s150 + $0x8] sm:$0xff] %v160
        %s163 = sand.u32 %s68, 1
        %s164 = scalar_lea.sflag [#allocation4], %s163
        %s165 = sand.u32 %s68, 1
        %s166 = smul.addr %s165, 16
        %s167 = scalar_lea.vmem [#allocation5], %s166
        // Predicated region
        $region29: #{tpu_custom_call.1} parent=23 // pred_check
          %p168 = pneg %p78
        $region30: #{tpu_custom_call.1} parent=23 // pred_check_branch
          %170 = sbr.rel (%p168) target = $region32
        $region31: #{tpu_custom_call.1} parent=23 // pred_region
          %s171 = smul.u32 2, %s23
          %s173 = ssub.s32 256, 256
          %174 = vsyncadd %s164, %s173
          %s175 = smul.addr %s22, 2
          %s176 = sadd.s32 %s171, %s175
          %s177 = smul.addr %s176, 128
          %s178 = scalar_lea.hbm %s1, %s177
          %s180 = sshll.u32 %s167, 4
          %s181 = int_to_ptr.vmem [resolvable:$true] %s180
          %183 = dma.vmem_to_hbm [thread:$0]  %s181, 256, %s178, %s164
        $region32: #{tpu_custom_call.1} parent=23 // pred_fallthru
          _
      $region24: #{tpu_custom_call.1} parent=5 // pred_fallthru
        _
      %p184 = scmp.le.s32.totalorder 2, %s13
      // Predicated region
      $region33: #{tpu_custom_call.1} parent=5 // pred_check
        %p185 = pneg %p184
      $region34: #{tpu_custom_call.1} parent=5 // pred_check_branch
        %187 = sbr.rel (%p185) target = $region36
      $region35: #{tpu_custom_call.1} parent=5 // pred_region
        %s188 = ssub.s32 %s13, 2
        // Predicated region
        $region37: #{tpu_custom_call.1} parent=35 // pred_check
          %p189 = pneg %p84
        $region38: #{tpu_custom_call.1} parent=35 // pred_check_branch
          %191 = sbr.rel (%p189) target = $region40
        $region39: #{tpu_custom_call.1} parent=35 // pred_region
          %s192 = sand.u32 %s69, 1
          %s193 = scalar_lea.sflag [#allocation4], %s192
          %s194 = sand.u32 %s69, 1
          %s195 = smul.addr %s194, 16
          %s196 = scalar_lea.vmem [#allocation5], %s195
          %197 = dma.done %s193, 256
        $region40: #{tpu_custom_call.1} parent=35 // pred_fallthru
          _
      $region36: #{tpu_custom_call.1} parent=5 // pred_fallthru
        _
    $region6: #{tpu_custom_call.1} parent=1 // loop_footer
      %s17 = sadd.s32 1, %s13
    $region7: #{tpu_custom_call.1} parent=1 // loop_footer_branch
      %12 = sbr.rel target = $region3
    $region8: #{tpu_custom_call.1} parent=1 // loop_exit
      _
    %198 = vsyncpa [#allocation3], 1
    %s199 = scalar_lea.sflag [#allocation3], 1
    %200 = vsyncpa %s199, 1
    %201 = vsyncpa [#allocation4], 1
    %s202 = scalar_lea.sflag [#allocation4], 1
    %203 = vsyncpa %s202, 1

</llo_original>
